<compile_context>
chip_gen: v7x
topology: tpu7x:2x2x1
jax: 0.10.0
libtpu: 0.0.40
codegen_flags: <defaults>
</compile_context>

<pallas_src>
import jax
import jax.numpy as jnp
from jax.experimental import pallas as pl
from jax.experimental.pallas import tpu as pltpu


def _conv1x1_kernel(w_ref, x_ref, o_ref):
    # w_ref : (Cout, Cin)   -- whole weight, resident in VMEM
    # x_ref : (Cin, HW)     -- one batch element's activations (N squeezed)
    # o_ref : (Cout, HW)
    o_ref[...] = jnp.dot(
        w_ref[...], x_ref[...], preferred_element_type=jnp.float32
    ).astype(o_ref.dtype)


def conv2d_1x1(x_nchw, weight):
    """1x1 conv, stride 1, no bias.

    x_nchw : (N, Cin, H, W) float32
    weight : (Cout, Cin, 1, 1) float32   (PyTorch Conv2d weight layout)
    returns: (N, Cout, H, W) float32
    """
    n, cin, h, w = x_nchw.shape
    cout = weight.shape[0]
    hw = h * w

    # Free views only: no pad, no transpose, no slice.
    x3 = x_nchw.reshape(n, cin, hw)     # (N, Cin, HW)
    w2 = weight.reshape(cout, cin)      # (Cout, Cin)

    itemsize = x_nchw.dtype.itemsize
    bytes_accessed = (
        x3.size * itemsize              # activations read
        + w2.size * itemsize            # weight read
        + n * cout * hw * itemsize      # output write
    )

    out = pl.pallas_call(
        _conv1x1_kernel,
        out_shape=jax.ShapeDtypeStruct((n, cout, hw), x_nchw.dtype),
        grid=(n,),
        in_specs=[
            # Weight: same block every step -> loaded into VMEM once.
            pl.BlockSpec((cout, cin), lambda b: (0, 0)),
            # Activations: one batch element per step, batch dim squeezed.
            pl.BlockSpec((None, cin, hw), lambda b: (b, 0, 0)),
        ],
        out_specs=pl.BlockSpec((None, cout, hw), lambda b: (b, 0, 0)),
        compiler_params=pltpu.CompilerParams(
            dimension_semantics=("parallel",),
        ),
        cost_estimate=pl.CostEstimate(
            flops=2 * n * cout * cin * hw,
            transcendentals=0,
            bytes_accessed=bytes_accessed,
        ),
    )(w2, x3)

    # Free view back to NCHW.
    return out.reshape(n, cout, h, w)


if __name__ == "__main__":
    key = jax.random.PRNGKey(0)
    kx, kw = jax.random.split(key)

    # Shapes implied by the module: x197 = randn([1, 400, 7, 7]),
    # Conv2d(400, 400, kernel_size=(1,1), stride=(1,1), bias=False).
    N, CIN, H, W = 1, 400, 7, 7
    COUT = 400

    x = jax.random.normal(kx, (N, CIN, H, W), dtype=jnp.float32)
    # Deterministic synthetic weight (not a checkpoint load).
    weight = jax.random.normal(kw, (COUT, CIN, 1, 1), dtype=jnp.float32) * 0.05

    out = conv2d_1x1(x, weight)
    out = jax.block_until_ready(out)

    # Plain-JAX reference for sanity.
    ref = jnp.einsum("nchw,oc->nohw", x, weight.reshape(COUT, CIN))
    assert out.shape == (N, COUT, H, W)
    assert jnp.allclose(out, ref, atol=1e-3, rtol=1e-3)

    print("KERNEL_OK")
</pallas_src>

<mosaic_0001>
module attributes {stable_mosaic.version = 11 : i64} {
  func.func @_conv1x1_kernel(%arg0: i32, %arg1: memref<400x400xf32, #tpu.memory_space<vmem>>, %arg2: memref<1x400x49xf32, #tpu.memory_space<vmem>>, %arg3: memref<1x400x49xf32, #tpu.memory_space<vmem>>) attributes {dimension_semantics = [#tpu.dimension_semantics<parallel>], iteration_bounds = array<i64: 1>, scalar_prefetch = 0 : i64, scratch_operands = 0 : i64, tpu.core_type = #tpu.core_type<tc>, window_params = [{pipeline_mode = #tpu.pipeline_mode<synchronous>, transform_indices = @transform_0, window_bounds = array<i64: 400, 400>}, {transform_indices = @transform_1, window_bounds = array<i64: 1, 400, 49>}, {transform_indices = @transform_2, window_bounds = array<i64: 1, 400, 49>}]} {
    %c0 = arith.constant 0 : index
    %c0_0 = arith.constant 0 : index
    %0 = vector.load %arg1[%c0, %c0_0] : memref<400x400xf32, #tpu.memory_space<vmem>>, vector<400x400xf32>
    %c0_1 = arith.constant 0 : index
    %c0_2 = arith.constant 0 : index
    %c0_3 = arith.constant 0 : index
    %1 = vector.load %arg2[%c0_1, %c0_2, %c0_3] : memref<1x400x49xf32, #tpu.memory_space<vmem>>, vector<1x400x49xf32>
    %2 = vector.shape_cast %1 : vector<1x400x49xf32> to vector<400x49xf32>
    %cst = arith.constant dense<0.000000e+00> : vector<400x49xf32>
    %3 = tpu.matmul %0, %2, %cst {dimension_numbers = #tpu.dot_dimension_numbers<[1], [0], [0], [1], [0, 0, 1, 1], [], []>} : vector<400x400xf32>, vector<400x49xf32>, vector<400x49xf32> -> vector<400x49xf32>
    %c0_4 = arith.constant 0 : index
    %c0_5 = arith.constant 0 : index
    %c0_6 = arith.constant 0 : index
    %4 = vector.load %arg3[%c0_4, %c0_5, %c0_6] : memref<1x400x49xf32, #tpu.memory_space<vmem>>, vector<1x400x49xf32>
    %5 = vector.shape_cast %4 : vector<1x400x49xf32> to vector<400x49xf32>
    %6 = vector.shape_cast %3 : vector<400x49xf32> to vector<1x400x49xf32>
    tpu.vector_store %arg3[%c0_4, %c0_5, %c0_6], %6 {strides = array<i32>} : memref<1x400x49xf32, #tpu.memory_space<vmem>>, vector<1x400x49xf32>,
    return
  }
  func.func @transform_0(%arg0: i32) -> (i32, i32) {
    %c0_i32 = arith.constant 0 : i32
    %c0_i32_0 = arith.constant 0 : i32
    %c0_i32_1 = arith.constant 0 : i32
    return %c0_i32, %c0_i32_0 : i32, i32
  }
  func.func @transform_1(%arg0: i32) -> (i32, i32, i32) {
    %c0_i32 = arith.constant 0 : i32
    %c0_i32_0 = arith.constant 0 : i32
    %c0_i32_1 = arith.constant 0 : i32
    return %arg0, %c0_i32, %c0_i32_0 : i32, i32, i32
  }
  func.func @transform_2(%arg0: i32) -> (i32, i32, i32) {
    %c0_i32 = arith.constant 0 : i32
    %c0_i32_0 = arith.constant 0 : i32
    %c0_i32_1 = arith.constant 0 : i32
    return %arg0, %c0_i32, %c0_i32_0 : i32, i32, i32
  }
}

</mosaic_0001>

<llo_original>
// kernel: tpu_custom_call.1
$region0: #{tpu_custom_call.1}
  #allocation0 [shape = 'u32[]', space=smem, size = 0x4, offset = 0x4, fixed_abs, tag = 'smem constant byte address 0x4 - core index']
  #allocation1 [shape = 'u32[144,128]{1,0:T(1,128)}', space=vmem, size = 0x12000, scoped, tag = 'internal scratch']
  %s0 = inlined_call_operand.hbm [shape: f32[400,400], index: 0, kind: input, shape index: {}]
  %s1 = inlined_call_operand.vmem [shape: f32[1,400,49], index: 1, kind: input, shape index: {}]
  %s2 = inlined_call_operand.vmem [shape: f32[1,400,49], index: 2, kind: output, shape index: {}]
  %s3 = sld [smem:[#allocation0]]
  $region22: #{tpu_custom_call.1} parent=0
    _
  %s5 = ssub.s32 1, %s3
  %s6 = scalar_select 0, %s5, %s3
  $region1: #{tpu_custom_call.1} parent=0
    #allocation2 [shape = 'u8[819200]{0}', space=vmem, size = 0xc8000, scoped, tag = 'input window, operand 0, single buffered']
    #allocation3 [shape = 's32[1]{0}', space=sflag, size = 0x4, scoped, tag = 'scoped memory for tpu_custom_call.1']
    %7 = vsyncpa [#allocation3], 0
    // Predicated region
    $region2: #{tpu_custom_call.1} parent=1 // pred_check
      _
    $region3: #{tpu_custom_call.1} parent=1 // pred_check_branch
      %9 = sbr.rel (0) target = $region5
    $region4: #{tpu_custom_call.1} parent=1 // pred_region
      %s11 = ssub.s32 25600, 25600
      %12 = vsyncadd [#allocation3], %s11
      %s13 = sshll.u32 [#allocation2], 4
      %s14 = int_to_ptr.vmem [resolvable:$true] %s13
      %19 = dma.hbm_to_vmem [thread:$0]  %s0, 25600, %s14, [#allocation3], 512, 512, 32
    $region5: #{tpu_custom_call.1} parent=1 // pred_fallthru
      _
    // Predicated region
    $region6: #{tpu_custom_call.1} parent=1 // pred_check
      _
    $region7: #{tpu_custom_call.1} parent=1 // pred_check_branch
      %21 = sbr.rel (0) target = $region9
    $region8: #{tpu_custom_call.1} parent=1 // pred_region
      _
    $region9: #{tpu_custom_call.1} parent=1 // pred_fallthru
      _
    // Predicated region
    $region10: #{tpu_custom_call.1} parent=1 // pred_check
      _
    $region11: #{tpu_custom_call.1} parent=1 // pred_check_branch
      %23 = sbr.rel (0) target = $region13
    $region12: #{tpu_custom_call.1} parent=1 // pred_region
      %24 = dma.done [#allocation3], 25600
    $region13: #{tpu_custom_call.1} parent=1 // pred_fallthru
      _
    %v25 = vld [vmem:[#allocation2] sm:$0xff]
    %v26 = vld [vmem:[#allocation2 + $0x8] sm:$0xff]
    %v27 = vld [vmem:[#allocation2 + $0x10] sm:$0xff]
    %v28 = vld [vmem:[#allocation2 + $0x18] sm:$0xff]
    %v29 = vld [vmem:[#allocation2 + $0x20] sm:$0xff]
    %v30 = vld [vmem:[#allocation2 + $0x28] sm:$0xff]
    %v31 = vld [vmem:[#allocation2 + $0x30] sm:$0xff]
    %v32 = vld [vmem:[#allocation2 + $0x38] sm:$0xff]
    %v33 = vld [vmem:[#allocation2 + $0x40] sm:$0xff]
    %v34 = vld [vmem:[#allocation2 + $0x48] sm:$0xff]
    %v35 = vld [vmem:[#allocation2 + $0x50] sm:$0xff]
    %v36 = vld [vmem:[#allocation2 + $0x58] sm:$0xff]
    %v37 = vld [vmem:[#allocation2 + $0x60] sm:$0xff]
    %v38 = vld [vmem:[#allocation2 + $0x68] sm:$0xff]
    %v39 = vld [vmem:[#allocation2 + $0x70] sm:$0xff]
    %v40 = vld [vmem:[#allocation2 + $0x78] sm:$0xff]
    %v41 = vld [vmem:[#allocation2 + $0x80] sm:$0xff]
    %v42 = vld [vmem:[#allocation2 + $0x88] sm:$0xff]
    %v43 = vld [vmem:[#allocation2 + $0x90] sm:$0xff]
    %v44 = vld [vmem:[#allocation2 + $0x98] sm:$0xff]
    %v45 = vld [vmem:[#allocation2 + $0xa0] sm:$0xff]
    %v46 = vld [vmem:[#allocation2 + $0xa8] sm:$0xff]
    %v47 = vld [vmem:[#allocation2 + $0xb0] sm:$0xff]
    %v48 = vld [vmem:[#allocation2 + $0xb8] sm:$0xff]
    %v49 = vld [vmem:[#allocation2 + $0xc0] sm:$0xff]
    %v50 = vld [vmem:[#allocation2 + $0xc8] sm:$0xff]
    %v51 = vld [vmem:[#allocation2 + $0xd0] sm:$0xff]
    %v52 = vld [vmem:[#allocation2 + $0xd8] sm:$0xff]
    %v53 = vld [vmem:[#allocation2 + $0xe0] sm:$0xff]
    %v54 = vld [vmem:[#allocation2 + $0xe8] sm:$0xff]
    %v55 = vld [vmem:[#allocation2 + $0xf0] sm:$0xff]
    %v56 = vld [vmem:[#allocation2 + $0xf8] sm:$0xff]
    %v57 = vld [vmem:[#allocation2 + $0x100] sm:$0xff]
    %v58 = vld [vmem:[#allocation2 + $0x108] sm:$0xff]
    %v59 = vld [vmem:[#allocation2 + $0x110] sm:$0xff]
    %v60 = vld [vmem:[#allocation2 + $0x118] sm:$0xff]
    %v61 = vld [vmem:[#allocation2 + $0x120] sm:$0xff]
    %v62 = vld [vmem:[#allocation2 + $0x128] sm:$0xff]
    %v63 = vld [vmem:[#allocation2 + $0x130] sm:$0xff]
    %v64 = vld [vmem:[#allocation2 + $0x138] sm:$0xff]
    %v65 = vld [vmem:[#allocation2 + $0x140] sm:$0xff]
    %v66 = vld [vmem:[#allocation2 + $0x148] sm:$0xff]
    %v67 = vld [vmem:[#allocation2 + $0x150] sm:$0xff]
    %v68 = vld [vmem:[#allocation2 + $0x158] sm:$0xff]
    %v69 = vld [vmem:[#allocation2 + $0x160] sm:$0xff]
    %v70 = vld [vmem:[#allocation2 + $0x168] sm:$0xff]
    %v71 = vld [vmem:[#allocation2 + $0x170] sm:$0xff]
    %v72 = vld [vmem:[#allocation2 + $0x178] sm:$0xff]
    %v73 = vld [vmem:[#allocation2 + $0x180] sm:$0xff]
    %v74 = vld [vmem:[#allocation2 + $0x188] sm:$0xff]
    %v75 = vld [vmem:[#allocation2 + $0x190] sm:$0xff]
    %v76 = vld [vmem:[#allocation2 + $0x198] sm:$0xff]
    %v77 = vld [vmem:[#allocation2 + $0x1a0] sm:$0xff]
    %v78 = vld [vmem:[#allocation2 + $0x1a8] sm:$0xff]
    %v79 = vld [vmem:[#allocation2 + $0x1b0] sm:$0xff]
    %v80 = vld [vmem:[#allocation2 + $0x1b8] sm:$0xff]
    %v81 = vld [vmem:[#allocation2 + $0x1c0] sm:$0xff]
    %v82 = vld [vmem:[#allocation2 + $0x1c8] sm:$0xff]
    %v83 = vld [vmem:[#allocation2 + $0x1d0] sm:$0xff]
    %v84 = vld [vmem:[#allocation2 + $0x1d8] sm:$0xff]
    %v85 = vld [vmem:[#allocation2 + $0x1e0] sm:$0xff]
    %v86 = vld [vmem:[#allocation2 + $0x1e8] sm:$0xff]
    %v87 = vld [vmem:[#allocation2 + $0x1f0] sm:$0xff]
    %v88 = vld [vmem:[#allocation2 + $0x1f8] sm:$0xff]
    %v89 = vld [vmem:[#allocation2 + $0x200] sm:$0xff]
    %v90 = vld [vmem:[#allocation2 + $0x208] sm:$0xff]
    %v91 = vld [vmem:[#allocation2 + $0x210] sm:$0xff]
    %v92 = vld [vmem:[#allocation2 + $0x218] sm:$0xff]
    %v93 = vld [vmem:[#allocation2 + $0x220] sm:$0xff]
    %v94 = vld [vmem:[#allocation2 + $0x228] sm:$0xff]
    %v95 = vld [vmem:[#allocation2 + $0x230] sm:$0xff]
    %v96 = vld [vmem:[#allocation2 + $0x238] sm:$0xff]
    %v97 = vld [vmem:[#allocation2 + $0x240] sm:$0xff]
    %v98 = vld [vmem:[#allocation2 + $0x248] sm:$0xff]
    %v99 = vld [vmem:[#allocation2 + $0x250] sm:$0xff]
    %v100 = vld [vmem:[#allocation2 + $0x258] sm:$0xff]
    %v101 = vld [vmem:[#allocation2 + $0x260] sm:$0xff]
    %v102 = vld [vmem:[#allocation2 + $0x268] sm:$0xff]
    %v103 = vld [vmem:[#allocation2 + $0x270] sm:$0xff]
    %v104 = vld [vmem:[#allocation2 + $0x278] sm:$0xff]
    %v105 = vld [vmem:[#allocation2 + $0x280] sm:$0xff]
    %v106 = vld [vmem:[#allocation2 + $0x288] sm:$0xff]
    %v107 = vld [vmem:[#allocation2 + $0x290] sm:$0xff]
    %v108 = vld [vmem:[#allocation2 + $0x298] sm:$0xff]
    %v109 = vld [vmem:[#allocation2 + $0x2a0] sm:$0xff]
    %v110 = vld [vmem:[#allocation2 + $0x2a8] sm:$0xff]
    %v111 = vld [vmem:[#allocation2 + $0x2b0] sm:$0xff]
    %v112 = vld [vmem:[#allocation2 + $0x2b8] sm:$0xff]
    %v113 = vld [vmem:[#allocation2 + $0x2c0] sm:$0xff]
    %v114 = vld [vmem:[#allocation2 + $0x2c8] sm:$0xff]
    %v115 = vld [vmem:[#allocation2 + $0x2d0] sm:$0xff]
    %v116 = vld [vmem:[#allocation2 + $0x2d8] sm:$0xff]
    %v117 = vld [vmem:[#allocation2 + $0x2e0] sm:$0xff]
    %v118 = vld [vmem:[#allocation2 + $0x2e8] sm:$0xff]
    %v119 = vld [vmem:[#allocation2 + $0x2f0] sm:$0xff]
    %v120 = vld [vmem:[#allocation2 + $0x2f8] sm:$0xff]
    %v121 = vld [vmem:[#allocation2 + $0x300] sm:$0xff]
    %v122 = vld [vmem:[#allocation2 + $0x308] sm:$0xff]
    %v123 = vld [vmem:[#allocation2 + $0x310] sm:$0xff]
    %v124 = vld [vmem:[#allocation2 + $0x318] sm:$0xff]
    %v125 = vld [vmem:[#allocation2 + $0x320] sm:$0xff]
    %v126 = vld [vmem:[#allocation2 + $0x328] sm:$0xff]
    %v127 = vld [vmem:[#allocation2 + $0x330] sm:$0xff]
    %v128 = vld [vmem:[#allocation2 + $0x338] sm:$0xff]
    %v129 = vld [vmem:[#allocation2 + $0x340] sm:$0xff]
    %v130 = vld [vmem:[#allocation2 + $0x348] sm:$0xff]
    %v131 = vld [vmem:[#allocation2 + $0x350] sm:$0xff]
    %v132 = vld [vmem:[#allocation2 + $0x358] sm:$0xff]
    %v133 = vld [vmem:[#allocation2 + $0x360] sm:$0xff]
    %v134 = vld [vmem:[#allocation2 + $0x368] sm:$0xff]
    %v135 = vld [vmem:[#allocation2 + $0x370] sm:$0xff]
    %v136 = vld [vmem:[#allocation2 + $0x378] sm:$0xff]
    %v137 = vld [vmem:[#allocation2 + $0x380] sm:$0xff]
    %v138 = vld [vmem:[#allocation2 + $0x388] sm:$0xff]
    %v139 = vld [vmem:[#allocation2 + $0x390] sm:$0xff]
    %v140 = vld [vmem:[#allocation2 + $0x398] sm:$0xff]
    %v141 = vld [vmem:[#allocation2 + $0x3a0] sm:$0xff]
    %v142 = vld [vmem:[#allocation2 + $0x3a8] sm:$0xff]
    %v143 = vld [vmem:[#allocation2 + $0x3b0] sm:$0xff]
    %v144 = vld [vmem:[#allocation2 + $0x3b8] sm:$0xff]
    %v145 = vld [vmem:[#allocation2 + $0x3c0] sm:$0xff]
    %v146 = vld [vmem:[#allocation2 + $0x3c8] sm:$0xff]
    %v147 = vld [vmem:[#allocation2 + $0x3d0] sm:$0xff]
    %v148 = vld [vmem:[#allocation2 + $0x3d8] sm:$0xff]
    %v149 = vld [vmem:[#allocation2 + $0x3e0] sm:$0xff]
    %v150 = vld [vmem:[#allocation2 + $0x3e8] sm:$0xff]
    %v151 = vld [vmem:[#allocation2 + $0x3f0] sm:$0xff]
    %v152 = vld [vmem:[#allocation2 + $0x3f8] sm:$0xff]
    %v153 = vld [vmem:[#allocation2 + $0x400] sm:$0xff]
    %v154 = vld [vmem:[#allocation2 + $0x408] sm:$0xff]
    %v155 = vld [vmem:[#allocation2 + $0x410] sm:$0xff]
    %v156 = vld [vmem:[#allocation2 + $0x418] sm:$0xff]
    %v157 = vld [vmem:[#allocation2 + $0x420] sm:$0xff]
    %v158 = vld [vmem:[#allocation2 + $0x428] sm:$0xff]
    %v159 = vld [vmem:[#allocation2 + $0x430] sm:$0xff]
    %v160 = vld [vmem:[#allocation2 + $0x438] sm:$0xff]
    %v161 = vld [vmem:[#allocation2 + $0x440] sm:$0xff]
    %v162 = vld [vmem:[#allocation2 + $0x448] sm:$0xff]
    %v163 = vld [vmem:[#allocation2 + $0x450] sm:$0xff]
    %v164 = vld [vmem:[#allocation2 + $0x458] sm:$0xff]
    %v165 = vld [vmem:[#allocation2 + $0x460] sm:$0xff]
    %v166 = vld [vmem:[#allocation2 + $0x468] sm:$0xff]
    %v167 = vld [vmem:[#allocation2 + $0x470] sm:$0xff]
    %v168 = vld [vmem:[#allocation2 + $0x478] sm:$0xff]
    %v169 = vld [vmem:[#allocation2 + $0x480] sm:$0xff]
    %v170 = vld [vmem:[#allocation2 + $0x488] sm:$0xff]
    %v171 = vld [vmem:[#allocation2 + $0x490] sm:$0xff]
    %v172 = vld [vmem:[#allocation2 + $0x498] sm:$0xff]
    %v173 = vld [vmem:[#allocation2 + $0x4a0] sm:$0xff]
    %v174 = vld [vmem:[#allocation2 + $0x4a8] sm:$0xff]
    %v175 = vld [vmem:[#allocation2 + $0x4b0] sm:$0xff]
    %v176 = vld [vmem:[#allocation2 + $0x4b8] sm:$0xff]
    %v177 = vld [vmem:[#allocation2 + $0x4c0] sm:$0xff]
    %v178 = vld [vmem:[#allocation2 + $0x4c8] sm:$0xff]
    %v179 = vld [vmem:[#allocation2 + $0x4d0] sm:$0xff]
    %v180 = vld [vmem:[#allocation2 + $0x4d8] sm:$0xff]
    %v181 = vld [vmem:[#allocation2 + $0x4e0] sm:$0xff]
    %v182 = vld [vmem:[#allocation2 + $0x4e8] sm:$0xff]
    %v183 = vld [vmem:[#allocation2 + $0x4f0] sm:$0xff]
    %v184 = vld [vmem:[#allocation2 + $0x4f8] sm:$0xff]
    %v185 = vld [vmem:[#allocation2 + $0x500] sm:$0xff]
    %v186 = vld [vmem:[#allocation2 + $0x508] sm:$0xff]
    %v187 = vld [vmem:[#allocation2 + $0x510] sm:$0xff]
    %v188 = vld [vmem:[#allocation2 + $0x518] sm:$0xff]
    %v189 = vld [vmem:[#allocation2 + $0x520] sm:$0xff]
    %v190 = vld [vmem:[#allocation2 + $0x528] sm:$0xff]
    %v191 = vld [vmem:[#allocation2 + $0x530] sm:$0xff]
    %v192 = vld [vmem:[#allocation2 + $0x538] sm:$0xff]
    %v193 = vld [vmem:[#allocation2 + $0x540] sm:$0xff]
    %v194 = vld [vmem:[#allocation2 + $0x548] sm:$0xff]
    %v195 = vld [vmem:[#allocation2 + $0x550] sm:$0xff]
    %v196 = vld [vmem:[#allocation2 + $0x558] sm:$0xff]
    %v197 = vld [vmem:[#allocation2 + $0x560] sm:$0xff]
    %v198 = vld [vmem:[#allocation2 + $0x568] sm:$0xff]
    %v199 = vld [vmem:[#allocation2 + $0x570] sm:$0xff]
    %v200 = vld [vmem:[#allocation2 + $0x578] sm:$0xff]
    %v201 = vld [vmem:[#allocation2 + $0x580] sm:$0xff]
    %v202 = vld [vmem:[#allocation2 + $0x588] sm:$0xff]
    %v203 = vld [vmem:[#allocation2 + $0x590] sm:$0xff]
    %v204 = vld [vmem:[#allocation2 + $0x598] sm:$0xff]
    %v205 = vld [vmem:[#allocation2 + $0x5a0] sm:$0xff]
    %v206 = vld [vmem:[#allocation2 + $0x5a8] sm:$0xff]
    %v207 = vld [vmem:[#allocation2 + $0x5b0] sm:$0xff]
    %v208 = vld [vmem:[#allocation2 + $0x5b8] sm:$0xff]
    %v209 = vld [vmem:[#allocation2 + $0x5c0] sm:$0xff]
    %v210 = vld [vmem:[#allocation2 + $0x5c8] sm:$0xff]
    %v211 = vld [vmem:[#allocation2 + $0x5d0] sm:$0xff]
    %v212 = vld [vmem:[#allocation2 + $0x5d8] sm:$0xff]
    %v213 = vld [vmem:[#allocation2 + $0x5e0] sm:$0xff]
    %v214 = vld [vmem:[#allocation2 + $0x5e8] sm:$0xff]
    %v215 = vld [vmem:[#allocation2 + $0x5f0] sm:$0xff]
    %v216 = vld [vmem:[#allocation2 + $0x5f8] sm:$0xff]
    %v217 = vld [vmem:[#allocation2 + $0x600] sm:$0xff]
    %v218 = vld [vmem:[#allocation2 + $0x608] sm:$0xff]
    %v219 = vld [vmem:[#allocation2 + $0x610] sm:$0xff]
    %v220 = vld [vmem:[#allocation2 + $0x618] sm:$0xff]
    %v221 = vld [vmem:[#allocation2 + $0x620] sm:$0xff]
    %v222 = vld [vmem:[#allocation2 + $0x628] sm:$0xff]
    %v223 = vld [vmem:[#allocation2 + $0x630] sm:$0xff]
    %v224 = vld [vmem:[#allocation2 + $0x638] sm:$0xff]
    %v225 = vld [vmem:[%s1] sm:$0xff]
    %v226 = vld [vmem:[%s1 + $0x8] sm:$0xff]
    %v227 = vld [vmem:[%s1 + $0x10] sm:$0xff]
    %v228 = vld [vmem:[%s1 + $0x18] sm:$0xff]
    %v229 = vld [vmem:[%s1 + $0x20] sm:$0xff]
    %v230 = vld [vmem:[%s1 + $0x28] sm:$0xff]
    %v231 = vld [vmem:[%s1 + $0x30] sm:$0xff]
    %v232 = vld [vmem:[%s1 + $0x38] sm:$0xff]
    %v233 = vld [vmem:[%s1 + $0x40] sm:$0xff]
    %v234 = vld [vmem:[%s1 + $0x48] sm:$0xff]
    %v235 = vld [vmem:[%s1 + $0x50] sm:$0xff]
    %v236 = vld [vmem:[%s1 + $0x58] sm:$0xff]
    %v237 = vld [vmem:[%s1 + $0x60] sm:$0xff]
    %v238 = vld [vmem:[%s1 + $0x68] sm:$0xff]
    %v239 = vld [vmem:[%s1 + $0x70] sm:$0xff]
    %v240 = vld [vmem:[%s1 + $0x78] sm:$0xff]
    %v241 = vld [vmem:[%s1 + $0x80] sm:$0xff]
    %v242 = vld [vmem:[%s1 + $0x88] sm:$0xff]
    %v243 = vld [vmem:[%s1 + $0x90] sm:$0xff]
    %v244 = vld [vmem:[%s1 + $0x98] sm:$0xff]
    %v245 = vld [vmem:[%s1 + $0xa0] sm:$0xff]
    %v246 = vld [vmem:[%s1 + $0xa8] sm:$0xff]
    %v247 = vld [vmem:[%s1 + $0xb0] sm:$0xff]
    %v248 = vld [vmem:[%s1 + $0xb8] sm:$0xff]
    %v249 = vld [vmem:[%s1 + $0xc0] sm:$0xff]
    %v250 = vld [vmem:[%s1 + $0xc8] sm:$0xff]
    %v251 = vld [vmem:[%s1 + $0xd0] sm:$0xff]
    %v252 = vld [vmem:[%s1 + $0xd8] sm:$0xff]
    %v253 = vld [vmem:[%s1 + $0xe0] sm:$0xff]
    %v254 = vld [vmem:[%s1 + $0xe8] sm:$0xff]
    %v255 = vld [vmem:[%s1 + $0xf0] sm:$0xff]
    %v256 = vld [vmem:[%s1 + $0xf8] sm:$0xff]
    %v257 = vld [vmem:[%s1 + $0x100] sm:$0xff]
    %v258 = vld [vmem:[%s1 + $0x108] sm:$0xff]
    %v259 = vld [vmem:[%s1 + $0x110] sm:$0xff]
    %v260 = vld [vmem:[%s1 + $0x118] sm:$0xff]
    %v261 = vld [vmem:[%s1 + $0x120] sm:$0xff]
    %v262 = vld [vmem:[%s1 + $0x128] sm:$0xff]
    %v263 = vld [vmem:[%s1 + $0x130] sm:$0xff]
    %v264 = vld [vmem:[%s1 + $0x138] sm:$0xff]
    %v265 = vld [vmem:[%s1 + $0x140] sm:$0xff]
    %v266 = vld [vmem:[%s1 + $0x148] sm:$0xff]
    %v267 = vld [vmem:[%s1 + $0x150] sm:$0xff]
    %v268 = vld [vmem:[%s1 + $0x158] sm:$0xff]
    %v269 = vld [vmem:[%s1 + $0x160] sm:$0xff]
    %v270 = vld [vmem:[%s1 + $0x168] sm:$0xff]
    %v271 = vld [vmem:[%s1 + $0x170] sm:$0xff]
    %v272 = vld [vmem:[%s1 + $0x178] sm:$0xff]
    %v273 = vld [vmem:[%s1 + $0x180] sm:$0xff]
    %v274 = vld [vmem:[%s1 + $0x188] sm:$0xff]
    %vm275 = vcmask 130048
    %v277 = vsel %vm275, %v28, 0
    %v280 = vsel %vm275, %v32, 0
    %v283 = vsel %vm275, %v36, 0
    %v286 = vsel %vm275, %v40, 0
    %v289 = vsel %vm275, %v44, 0
    %v292 = vsel %vm275, %v48, 0
    %v295 = vsel %vm275, %v52, 0
    %v298 = vsel %vm275, %v56, 0
    %v301 = vsel %vm275, %v60, 0
    %v304 = vsel %vm275, %v64, 0
    %v307 = vsel %vm275, %v68, 0
    %v310 = vsel %vm275, %v72, 0
    %v313 = vsel %vm275, %v76, 0
    %v316 = vsel %vm275, %v80, 0
    %v319 = vsel %vm275, %v84, 0
    %v322 = vsel %vm275, %v88, 0
    %v325 = vsel %vm275, %v92, 0
    %v328 = vsel %vm275, %v96, 0
    %v331 = vsel %vm275, %v100, 0
    %v334 = vsel %vm275, %v104, 0
    %v337 = vsel %vm275, %v108, 0
    %v340 = vsel %vm275, %v112, 0
    %v343 = vsel %vm275, %v116, 0
    %v346 = vsel %vm275, %v120, 0
    %v349 = vsel %vm275, %v124, 0
    %v352 = vsel %vm275, %v128, 0
    %v355 = vsel %vm275, %v132, 0
    %v358 = vsel %vm275, %v136, 0
    %v361 = vsel %vm275, %v140, 0
    %v364 = vsel %vm275, %v144, 0
    %v367 = vsel %vm275, %v148, 0
    %v370 = vsel %vm275, %v152, 0
    %v373 = vsel %vm275, %v156, 0
    %v376 = vsel %vm275, %v160, 0
    %v379 = vsel %vm275, %v164, 0
    %v382 = vsel %vm275, %v168, 0
    %v385 = vsel %vm275, %v172, 0
    %v388 = vsel %vm275, %v176, 0
    %v391 = vsel %vm275, %v180, 0
    %v394 = vsel %vm275, %v184, 0
    %v397 = vsel %vm275, %v188, 0
    %v400 = vsel %vm275, %v192, 0
    %v403 = vsel %vm275, %v196, 0
    %v406 = vsel %vm275, %v200, 0
    %v409 = vsel %vm275, %v204, 0
    %v412 = vsel %vm275, %v208, 0
    %v415 = vsel %vm275, %v212, 0
    %v418 = vsel %vm275, %v216, 0
    %v421 = vsel %vm275, %v220, 0
    %v424 = vsel %vm275, %v224, 0
    %426 = vmatprep.subr.mxu0 0.0
    %427 = vmatpush1.msra.mxu0 %v225
    %428 = vmatprep.subr.mxu0 0.0
    %429 = vmatpush1.msra.mxu0 %v226
    %430 = vmatprep.subr.mxu0 0.0
    %431 = vmatpush1.msra.mxu0 %v227
    %432 = vmatprep.subr.mxu0 0.0
    %433 = vmatpush1.msra.mxu0 %v228
    %434 = vmatprep.subr.mxu0 0.0
    %435 = vmatpush1.msra.mxu0 %v229
    %436 = vmatprep.subr.mxu0 0.0
    %437 = vmatpush1.msra.mxu0 %v230
    %438 = vmatprep.subr.mxu0 0.0
    %439 = vmatpush1.msra.mxu0 %v231
    %440 = vmatprep.subr.mxu0 0.0
    %441 = vmatpush1.msra.mxu0 %v232
    %442 = vmatprep.subr.mxu0 0.0
    %443 = vmatpush1.msra.mxu0 %v233
    %444 = vmatprep.subr.mxu0 0.0
    %445 = vmatpush1.msra.mxu0 %v234
    %446 = vmatprep.subr.mxu0 0.0
    %447 = vmatpush1.msra.mxu0 %v235
    %448 = vmatprep.subr.mxu0 0.0
    %449 = vmatpush1.msra.mxu0 %v236
    %450 = vmatprep.subr.mxu0 0.0
    %451 = vmatpush1.msra.mxu0 %v237
    %452 = vmatprep.subr.mxu0 0.0
    %453 = vmatpush1.msra.mxu0 %v238
    %454 = vmatprep.subr.mxu0 0.0
    %455 = vmatpush1.msra.mxu0 %v239
    %456 = vmatprep.subr.mxu0 0.0
    %457 = vmatpush1.msra.mxu0 %v240
    %458 = vmatprep.subr.mxu0 0.0
    %459 = vmatpush1.msra.mxu0 %v241
    %460 = vmatprep.subr.mxu0 0.0
    %461 = vmatpush1.msra.mxu0 %v242
    %462 = vmatprep.subr.mxu0 0.0
    %463 = vmatpush1.msra.mxu0 %v243
    %464 = vmatprep.subr.mxu0 0.0
    %465 = vmatpush1.msra.mxu0 %v244
    %466 = vmatprep.subr.mxu0 0.0
    %467 = vmatpush1.msra.mxu0 %v245
    %468 = vmatprep.subr.mxu0 0.0
    %469 = vmatpush1.msra.mxu0 %v246
    %470 = vmatprep.subr.mxu0 0.0
    %471 = vmatpush1.msra.mxu0 %v247
    %472 = vmatprep.subr.mxu0 0.0
    %473 = vmatpush1.msra.mxu0 %v248
    %474 = vmatprep.subr.mxu0 0.0
    %475 = vmatpush1.msra.mxu0 %v249
    %476 = vmatprep.subr.mxu0 0.0
    %477 = vmatpush1.msra.mxu0 %v250
    %478 = vmatprep.subr.mxu0 0.0
    %479 = vmatpush1.msra.mxu0 %v251
    %480 = vmatprep.subr.mxu0 0.0
    %481 = vmatpush1.msra.mxu0 %v252
    %482 = vmatprep.subr.mxu0 0.0
    %483 = vmatpush1.msra.mxu0 %v253
    %484 = vmatprep.subr.mxu0 0.0
    %485 = vmatpush1.msra.mxu0 %v254
    %486 = vmatprep.subr.mxu0 0.0
    %487 = vmatpush1.msra.mxu0 %v255
    %488 = vmatprep.subr.mxu0 0.0
    %489 = vmatpush1.msra.mxu0 %v256
    %490 = vmatprep.mubr.f32.mxu0 %v26
    %491 = vmatmul.mubr.f32.gmra.mrb[0].mxu0 %v25
    %v492 = vpop.f32.mrb[0].mxu0
    %v493 = vadd.f32 0.0, %v492
    %v494 = vpop.f32.mrb[0].mxu0
    %495 = vmatprep.mubr.f32.mxu0 %v30
    %496 = vmatmul.mubr.f32.gmra.mrb[0].mxu0 %v29
    %v497 = vpop.f32.mrb[0].mxu0
    %v498 = vadd.f32 0.0, %v497
    %v499 = vpop.f32.mrb[0].mxu0
    %500 = vmatprep.mubr.f32.mxu0 %v34
    %501 = vmatmul.mubr.f32.gmra.mrb[0].mxu0 %v33
    %v502 = vpop.f32.mrb[0].mxu0
    %v503 = vadd.f32 0.0, %v502
    %v504 = vpop.f32.mrb[0].mxu0
    %505 = vmatprep.mubr.f32.mxu0 %v38
    %506 = vmatmul.mubr.f32.gmra.mrb[0].mxu0 %v37
    %v507 = vpop.f32.mrb[0].mxu0
    %v508 = vadd.f32 0.0, %v507
    %v509 = vpop.f32.mrb[0].mxu0
    %510 = vmatprep.mubr.f32.mxu0 %v42
    %511 = vmatmul.mubr.f32.gmra.mrb[0].mxu0 %v41
    %v512 = vpop.f32.mrb[0].mxu0
    %v513 = vadd.f32 0.0, %v512
    %v514 = vpop.f32.mrb[0].mxu0
    %515 = vmatprep.mubr.f32.mxu0 %v46
    %516 = vmatmul.mubr.f32.gmra.mrb[0].mxu0 %v45
    %v517 = vpop.f32.mrb[0].mxu0
    %v518 = vadd.f32 0.0, %v517
    %v519 = vpop.f32.mrb[0].mxu0
    %520 = vmatprep.mubr.f32.mxu0 %v50
    %521 = vmatmul.mubr.f32.gmra.mrb[0].mxu0 %v49
    %v522 = vpop.f32.mrb[0].mxu0
    %v523 = vadd.f32 0.0, %v522
    %v524 = vpop.f32.mrb[0].mxu0
    %525 = vmatprep.mubr.f32.mxu0 %v54
    %526 = vmatmul.mubr.f32.gmra.mrb[0].mxu0 %v53
    %v527 = vpop.f32.mrb[0].mxu0
    %v528 = vadd.f32 0.0, %v527
    %v529 = vpop.f32.mrb[0].mxu0
    %530 = vmatprep.mubr.f32.mxu0 %v58
    %531 = vmatmul.mubr.f32.gmra.mrb[0].mxu0 %v57
    %v532 = vpop.f32.mrb[0].mxu0
    %v533 = vadd.f32 0.0, %v532
    %v534 = vpop.f32.mrb[0].mxu0
    %535 = vmatprep.mubr.f32.mxu0 %v62
    %536 = vmatmul.mubr.f32.gmra.mrb[0].mxu0 %v61
    %v537 = vpop.f32.mrb[0].mxu0
    %v538 = vadd.f32 0.0, %v537
    %v539 = vpop.f32.mrb[0].mxu0
    %540 = vmatprep.mubr.f32.mxu0 %v66
    %541 = vmatmul.mubr.f32.gmra.mrb[0].mxu0 %v65
    %v542 = vpop.f32.mrb[0].mxu0
    %v543 = vadd.f32 0.0, %v542
    %v544 = vpop.f32.mrb[0].mxu0
    %545 = vmatprep.mubr.f32.mxu0 %v70
    %546 = vmatmul.mubr.f32.gmra.mrb[0].mxu0 %v69
    %v547 = vpop.f32.mrb[0].mxu0
    %v548 = vadd.f32 0.0, %v547
    %v549 = vpop.f32.mrb[0].mxu0
    %550 = vmatprep.mubr.f32.mxu0 %v74
    %551 = vmatmul.mubr.f32.gmra.mrb[0].mxu0 %v73
    %v552 = vpop.f32.mrb[0].mxu0
    %v553 = vadd.f32 0.0, %v552
    %v554 = vpop.f32.mrb[0].mxu0
    %555 = vmatprep.mubr.f32.mxu0 %v78
    %556 = vmatmul.mubr.f32.gmra.mrb[0].mxu0 %v77
    %v557 = vpop.f32.mrb[0].mxu0
    %v558 = vadd.f32 0.0, %v557
    %v559 = vpop.f32.mrb[0].mxu0
    %560 = vmatprep.mubr.f32.mxu0 %v82
    %561 = vmatmul.mubr.f32.gmra.mrb[0].mxu0 %v81
    %v562 = vpop.f32.mrb[0].mxu0
    %v563 = vadd.f32 0.0, %v562
    %v564 = vpop.f32.mrb[0].mxu0
    %565 = vmatprep.mubr.f32.mxu0 %v86
    %566 = vmatmul.mubr.f32.gmra.mrb[0].mxu0 %v85
    %v567 = vpop.f32.mrb[0].mxu0
    %v568 = vadd.f32 0.0, %v567
    %v569 = vpop.f32.mrb[0].mxu0
    %570 = vmatprep.mubr.f32.mxu0 %v90
    %571 = vmatmul.mubr.f32.gmra.mrb[0].mxu0 %v89
    %v572 = vpop.f32.mrb[0].mxu0
    %v573 = vadd.f32 0.0, %v572
    %v574 = vpop.f32.mrb[0].mxu0
    %575 = vmatprep.mubr.f32.mxu0 %v94
    %576 = vmatmul.mubr.f32.gmra.mrb[0].mxu0 %v93
    %v577 = vpop.f32.mrb[0].mxu0
    %v578 = vadd.f32 0.0, %v577
    %v579 = vpop.f32.mrb[0].mxu0
    %580 = vmatprep.mubr.f32.mxu0 %v98
    %581 = vmatmul.mubr.f32.gmra.mrb[0].mxu0 %v97
    %v582 = vpop.f32.mrb[0].mxu0
    %v583 = vadd.f32 0.0, %v582
    %v584 = vpop.f32.mrb[0].mxu0
    %585 = vmatprep.mubr.f32.mxu0 %v102
    %586 = vmatmul.mubr.f32.gmra.mrb[0].mxu0 %v101
    %v587 = vpop.f32.mrb[0].mxu0
    %v588 = vadd.f32 0.0, %v587
    %v589 = vpop.f32.mrb[0].mxu0
    %590 = vmatprep.mubr.f32.mxu0 %v106
    %591 = vmatmul.mubr.f32.gmra.mrb[0].mxu0 %v105
    %v592 = vpop.f32.mrb[0].mxu0
    %v593 = vadd.f32 0.0, %v592
    %v594 = vpop.f32.mrb[0].mxu0
    %595 = vmatprep.mubr.f32.mxu0 %v110
    %596 = vmatmul.mubr.f32.gmra.mrb[0].mxu0 %v109
    %v597 = vpop.f32.mrb[0].mxu0
    %v598 = vadd.f32 0.0, %v597
    %v599 = vpop.f32.mrb[0].mxu0
    %600 = vmatprep.mubr.f32.mxu0 %v114
    %601 = vmatmul.mubr.f32.gmra.mrb[0].mxu0 %v113
    %v602 = vpop.f32.mrb[0].mxu0
    %v603 = vadd.f32 0.0, %v602
    %v604 = vpop.f32.mrb[0].mxu0
    %605 = vmatprep.mubr.f32.mxu0 %v118
    %606 = vmatmul.mubr.f32.gmra.mrb[0].mxu0 %v117
    %v607 = vpop.f32.mrb[0].mxu0
    %v608 = vadd.f32 0.0, %v607
    %v609 = vpop.f32.mrb[0].mxu0
    %610 = vmatprep.mubr.f32.mxu0 %v122
    %611 = vmatmul.mubr.f32.gmra.mrb[0].mxu0 %v121
    %v612 = vpop.f32.mrb[0].mxu0
    %v613 = vadd.f32 0.0, %v612
    %v614 = vpop.f32.mrb[0].mxu0
    %615 = vmatprep.mubr.f32.mxu0 %v126
    %616 = vmatmul.mubr.f32.gmra.mrb[0].mxu0 %v125
    %v617 = vpop.f32.mrb[0].mxu0
    %v618 = vadd.f32 0.0, %v617
    %v619 = vpop.f32.mrb[0].mxu0
    %620 = vmatprep.mubr.f32.mxu0 %v130
    %621 = vmatmul.mubr.f32.gmra.mrb[0].mxu0 %v129
    %v622 = vpop.f32.mrb[0].mxu0
    %v623 = vadd.f32 0.0, %v622
    %v624 = vpop.f32.mrb[0].mxu0
    %625 = vmatprep.mubr.f32.mxu0 %v134
    %626 = vmatmul.mubr.f32.gmra.mrb[0].mxu0 %v133
    %v627 = vpop.f32.mrb[0].mxu0
    %v628 = vadd.f32 0.0, %v627
    %v629 = vpop.f32.mrb[0].mxu0
    %630 = vmatprep.mubr.f32.mxu0 %v138
    %631 = vmatmul.mubr.f32.gmra.mrb[0].mxu0 %v137
    %v632 = vpop.f32.mrb[0].mxu0
    %v633 = vadd.f32 0.0, %v632
    %v634 = vpop.f32.mrb[0].mxu0
    %635 = vmatprep.mubr.f32.mxu0 %v142
    %636 = vmatmul.mubr.f32.gmra.mrb[0].mxu0 %v141
    %v637 = vpop.f32.mrb[0].mxu0
    %v638 = vadd.f32 0.0, %v637
    %v639 = vpop.f32.mrb[0].mxu0
    %640 = vmatprep.mubr.f32.mxu0 %v146
    %641 = vmatmul.mubr.f32.gmra.mrb[0].mxu0 %v145
    %v642 = vpop.f32.mrb[0].mxu0
    %v643 = vadd.f32 0.0, %v642
    %v644 = vpop.f32.mrb[0].mxu0
    %645 = vmatprep.mubr.f32.mxu0 %v150
    %646 = vmatmul.mubr.f32.gmra.mrb[0].mxu0 %v149
    %v647 = vpop.f32.mrb[0].mxu0
    %v648 = vadd.f32 0.0, %v647
    %v649 = vpop.f32.mrb[0].mxu0
    %650 = vmatprep.mubr.f32.mxu0 %v154
    %651 = vmatmul.mubr.f32.gmra.mrb[0].mxu0 %v153
    %v652 = vpop.f32.mrb[0].mxu0
    %v653 = vadd.f32 0.0, %v652
    %v654 = vpop.f32.mrb[0].mxu0
    %655 = vmatprep.mubr.f32.mxu0 %v158
    %656 = vmatmul.mubr.f32.gmra.mrb[0].mxu0 %v157
    %v657 = vpop.f32.mrb[0].mxu0
    %v658 = vadd.f32 0.0, %v657
    %v659 = vpop.f32.mrb[0].mxu0
    %660 = vmatprep.mubr.f32.mxu0 %v162
    %661 = vmatmul.mubr.f32.gmra.mrb[0].mxu0 %v161
    %v662 = vpop.f32.mrb[0].mxu0
    %v663 = vadd.f32 0.0, %v662
    %v664 = vpop.f32.mrb[0].mxu0
    %665 = vmatprep.mubr.f32.mxu0 %v166
    %666 = vmatmul.mubr.f32.gmra.mrb[0].mxu0 %v165
    %v667 = vpop.f32.mrb[0].mxu0
    %v668 = vadd.f32 0.0, %v667
    %v669 = vpop.f32.mrb[0].mxu0
    %670 = vmatprep.mubr.f32.mxu0 %v170
    %671 = vmatmul.mubr.f32.gmra.mrb[0].mxu0 %v169
    %v672 = vpop.f32.mrb[0].mxu0
    %v673 = vadd.f32 0.0, %v672
    %v674 = vpop.f32.mrb[0].mxu0
    %675 = vmatprep.mubr.f32.mxu0 %v174
    %676 = vmatmul.mubr.f32.gmra.mrb[0].mxu0 %v173
    %v677 = vpop.f32.mrb[0].mxu0
    %v678 = vadd.f32 0.0, %v677
    %v679 = vpop.f32.mrb[0].mxu0
    %680 = vmatprep.mubr.f32.mxu0 %v178
    %681 = vmatmul.mubr.f32.gmra.mrb[0].mxu0 %v177
    %v682 = vpop.f32.mrb[0].mxu0
    %v683 = vadd.f32 0.0, %v682
    %v684 = vpop.f32.mrb[0].mxu0
    %685 = vmatprep.mubr.f32.mxu0 %v182
    %686 = vmatmul.mubr.f32.gmra.mrb[0].mxu0 %v181
    %v687 = vpop.f32.mrb[0].mxu0
    %v688 = vadd.f32 0.0, %v687
    %v689 = vpop.f32.mrb[0].mxu0
    %690 = vmatprep.mubr.f32.mxu0 %v186
    %691 = vmatmul.mubr.f32.gmra.mrb[0].mxu0 %v185
    %v692 = vpop.f32.mrb[0].mxu0
    %v693 = vadd.f32 0.0, %v692
    %v694 = vpop.f32.mrb[0].mxu0
    %695 = vmatprep.mubr.f32.mxu0 %v190
    %696 = vmatmul.mubr.f32.gmra.mrb[0].mxu0 %v189
    %v697 = vpop.f32.mrb[0].mxu0
    %v698 = vadd.f32 0.0, %v697
    %v699 = vpop.f32.mrb[0].mxu0
    %700 = vmatprep.mubr.f32.mxu0 %v194
    %701 = vmatmul.mubr.f32.gmra.mrb[0].mxu0 %v193
    %v702 = vpop.f32.mrb[0].mxu0
    %v703 = vadd.f32 0.0, %v702
    %v704 = vpop.f32.mrb[0].mxu0
    %705 = vmatprep.mubr.f32.mxu0 %v198
    %706 = vmatmul.mubr.f32.gmra.mrb[0].mxu0 %v197
    %v707 = vpop.f32.mrb[0].mxu0
    %v708 = vadd.f32 0.0, %v707
    %v709 = vpop.f32.mrb[0].mxu0
    %710 = vmatprep.mubr.f32.mxu0 %v202
    %711 = vmatmul.mubr.f32.gmra.mrb[0].mxu0 %v201
    %v712 = vpop.f32.mrb[0].mxu0
    %v713 = vadd.f32 0.0, %v712
    %v714 = vpop.f32.mrb[0].mxu0
    %715 = vmatprep.mubr.f32.mxu0 %v206
    %716 = vmatmul.mubr.f32.gmra.mrb[0].mxu0 %v205
    %v717 = vpop.f32.mrb[0].mxu0
    %v718 = vadd.f32 0.0, %v717
    %v719 = vpop.f32.mrb[0].mxu0
    %720 = vmatprep.mubr.f32.mxu0 %v210
    %721 = vmatmul.mubr.f32.gmra.mrb[0].mxu0 %v209
    %v722 = vpop.f32.mrb[0].mxu0
    %v723 = vadd.f32 0.0, %v722
    %v724 = vpop.f32.mrb[0].mxu0
    %725 = vmatprep.mubr.f32.mxu0 %v214
    %726 = vmatmul.mubr.f32.gmra.mrb[0].mxu0 %v213
    %v727 = vpop.f32.mrb[0].mxu0
    %v728 = vadd.f32 0.0, %v727
    %v729 = vpop.f32.mrb[0].mxu0
    %730 = vmatprep.mubr.f32.mxu0 %v218
    %731 = vmatmul.mubr.f32.gmra.mrb[0].mxu0 %v217
    %v732 = vpop.f32.mrb[0].mxu0
    %v733 = vadd.f32 0.0, %v732
    %v734 = vpop.f32.mrb[0].mxu0
    %735 = vmatprep.mubr.f32.mxu0 %v222
    %736 = vmatmul.mubr.f32.gmra.mrb[0].mxu0 %v221
    %v737 = vpop.f32.mrb[0].mxu0
    %v738 = vadd.f32 0.0, %v737
    %v739 = vpop.f32.mrb[0].mxu0
    %740 = vdwg.mxu0
    %741 = vmatprep.subr.mxu0 0.0
    %742 = vmatpush1.msra.mxu0 %v257
    %743 = vmatprep.subr.mxu0 0.0
    %744 = vmatpush1.msra.mxu0 %v258
    %745 = vmatprep.subr.mxu0 0.0
    %746 = vmatpush1.msra.mxu0 %v259
    %747 = vmatprep.subr.mxu0 0.0
    %748 = vmatpush1.msra.mxu0 %v260
    %749 = vmatprep.subr.mxu0 0.0
    %750 = vmatpush1.msra.mxu0 %v261
    %751 = vmatprep.subr.mxu0 0.0
    %752 = vmatpush1.msra.mxu0 %v262
    %753 = vmatprep.subr.mxu0 0.0
    %754 = vmatpush1.msra.mxu0 %v263
    %755 = vmatprep.subr.mxu0 0.0
    %756 = vmatpush1.msra.mxu0 %v264
    %757 = vmatprep.subr.mxu0 0.0
    %758 = vmatpush1.msra.mxu0 %v265
    %759 = vmatprep.subr.mxu0 0.0
    %760 = vmatpush1.msra.mxu0 %v266
    %761 = vmatprep.subr.mxu0 0.0
    %762 = vmatpush1.msra.mxu0 %v267
    %763 = vmatprep.subr.mxu0 0.0
    %764 = vmatpush1.msra.mxu0 %v268
    %765 = vmatprep.subr.mxu0 0.0
    %766 = vmatpush1.msra.mxu0 %v269
    %767 = vmatprep.subr.mxu0 0.0
    %768 = vmatpush1.msra.mxu0 %v270
    %769 = vmatprep.subr.mxu0 0.0
    %770 = vmatpush1.msra.mxu0 %v271
    %771 = vmatprep.subr.mxu0 0.0
    %772 = vmatpush1.msra.mxu0 %v272
    %773 = vmatprep.subr.mxu0 0.0
    %774 = vmatpush1.msra.mxu0 %v273
    %775 = vmatprep.subr.mxu0 0.0
    %776 = vmatpush1.msra.mxu0 %v274
    %777 = vmatprep.subr.mxu0 0.0
    %778 = vmatpush1.msra.mxu0 0.0
    %779 = vmatprep.subr.mxu0 0.0
    %780 = vmatpush1.msra.mxu0 0.0
    %781 = vmatprep.subr.mxu0 0.0
    %782 = vmatpush1.msra.mxu0 0.0
    %783 = vmatprep.subr.mxu0 0.0
    %784 = vmatpush1.msra.mxu0 0.0
    %785 = vmatprep.subr.mxu0 0.0
    %786 = vmatpush1.msra.mxu0 0.0
    %787 = vmatprep.subr.mxu0 0.0
    %788 = vmatpush1.msra.mxu0 0.0
    %789 = vmatprep.subr.mxu0 0.0
    %790 = vmatpush1.msra.mxu0 0.0
    %791 = vmatprep.subr.mxu0 0.0
    %792 = vmatpush1.msra.mxu0 0.0
    %793 = vmatprep.subr.mxu0 0.0
    %794 = vmatpush1.msra.mxu0 0.0
    %795 = vmatprep.subr.mxu0 0.0
    %796 = vmatpush1.msra.mxu0 0.0
    %797 = vmatprep.subr.mxu0 0.0
    %798 = vmatpush1.msra.mxu0 0.0
    %799 = vmatprep.subr.mxu0 0.0
    %800 = vmatpush1.msra.mxu0 0.0
    %801 = vmatprep.subr.mxu0 0.0
    %802 = vmatpush1.msra.mxu0 0.0
    %803 = vmatprep.subr.mxu0 0.0
    %804 = vmatpush1.msra.mxu0 0.0
    %805 = vmatprep.mubr.f32.mxu0 %v277
    %806 = vmatmul.mubr.f32.gmra.mrb[0].mxu0 %v27
    %v807 = vpop.f32.mrb[0].mxu0
    %v808 = vadd.f32 %v493, %v807
    %v809 = vpop.f32.mrb[0].mxu0
    %810 = vmatprep.mubr.f32.mxu0 %v280
    %811 = vmatmul.mubr.f32.gmra.mrb[0].mxu0 %v31
    %v812 = vpop.f32.mrb[0].mxu0
    %v813 = vadd.f32 %v498, %v812
    %v814 = vpop.f32.mrb[0].mxu0
    %815 = vmatprep.mubr.f32.mxu0 %v283
    %816 = vmatmul.mubr.f32.gmra.mrb[0].mxu0 %v35
    %v817 = vpop.f32.mrb[0].mxu0
    %v818 = vadd.f32 %v503, %v817
    %v819 = vpop.f32.mrb[0].mxu0
    %820 = vmatprep.mubr.f32.mxu0 %v286
    %821 = vmatmul.mubr.f32.gmra.mrb[0].mxu0 %v39
    %v822 = vpop.f32.mrb[0].mxu0
    %v823 = vadd.f32 %v508, %v822
    %v824 = vpop.f32.mrb[0].mxu0
    %825 = vmatprep.mubr.f32.mxu0 %v289
    %826 = vmatmul.mubr.f32.gmra.mrb[0].mxu0 %v43
    %v827 = vpop.f32.mrb[0].mxu0
    %v828 = vadd.f32 %v513, %v827
    %v829 = vpop.f32.mrb[0].mxu0
    %830 = vmatprep.mubr.f32.mxu0 %v292
    %831 = vmatmul.mubr.f32.gmra.mrb[0].mxu0 %v47
    %v832 = vpop.f32.mrb[0].mxu0
    %v833 = vadd.f32 %v518, %v832
    %v834 = vpop.f32.mrb[0].mxu0
    %835 = vmatprep.mubr.f32.mxu0 %v295
    %836 = vmatmul.mubr.f32.gmra.mrb[0].mxu0 %v51
    %v837 = vpop.f32.mrb[0].mxu0
    %v838 = vadd.f32 %v523, %v837
    %v839 = vpop.f32.mrb[0].mxu0
    %840 = vmatprep.mubr.f32.mxu0 %v298
    %841 = vmatmul.mubr.f32.gmra.mrb[0].mxu0 %v55
    %v842 = vpop.f32.mrb[0].mxu0
    %v843 = vadd.f32 %v528, %v842
    %v844 = vpop.f32.mrb[0].mxu0
    %845 = vmatprep.mubr.f32.mxu0 %v301
    %846 = vmatmul.mubr.f32.gmra.mrb[0].mxu0 %v59
    %v847 = vpop.f32.mrb[0].mxu0
    %v848 = vadd.f32 %v533, %v847
    %v849 = vpop.f32.mrb[0].mxu0
    %850 = vmatprep.mubr.f32.mxu0 %v304
    %851 = vmatmul.mubr.f32.gmra.mrb[0].mxu0 %v63
    %v852 = vpop.f32.mrb[0].mxu0
    %v853 = vadd.f32 %v538, %v852
    %v854 = vpop.f32.mrb[0].mxu0
    %855 = vmatprep.mubr.f32.mxu0 %v307
    %856 = vmatmul.mubr.f32.gmra.mrb[0].mxu0 %v67
    %v857 = vpop.f32.mrb[0].mxu0
    %v858 = vadd.f32 %v543, %v857
    %v859 = vpop.f32.mrb[0].mxu0
    %860 = vmatprep.mubr.f32.mxu0 %v310
    %861 = vmatmul.mubr.f32.gmra.mrb[0].mxu0 %v71
    %v862 = vpop.f32.mrb[0].mxu0
    %v863 = vadd.f32 %v548, %v862
    %v864 = vpop.f32.mrb[0].mxu0
    %865 = vmatprep.mubr.f32.mxu0 %v313
    %866 = vmatmul.mubr.f32.gmra.mrb[0].mxu0 %v75
    %v867 = vpop.f32.mrb[0].mxu0
    %v868 = vadd.f32 %v553, %v867
    %v869 = vpop.f32.mrb[0].mxu0
    %870 = vmatprep.mubr.f32.mxu0 %v316
    %871 = vmatmul.mubr.f32.gmra.mrb[0].mxu0 %v79
    %v872 = vpop.f32.mrb[0].mxu0
    %v873 = vadd.f32 %v558, %v872
    %v874 = vpop.f32.mrb[0].mxu0
    %875 = vmatprep.mubr.f32.mxu0 %v319
    %876 = vmatmul.mubr.f32.gmra.mrb[0].mxu0 %v83
    %v877 = vpop.f32.mrb[0].mxu0
    %v878 = vadd.f32 %v563, %v877
    %v879 = vpop.f32.mrb[0].mxu0
    %880 = vmatprep.mubr.f32.mxu0 %v322
    %881 = vmatmul.mubr.f32.gmra.mrb[0].mxu0 %v87
    %v882 = vpop.f32.mrb[0].mxu0
    %v883 = vadd.f32 %v568, %v882
    %v884 = vpop.f32.mrb[0].mxu0
    %885 = vmatprep.mubr.f32.mxu0 %v325
    %886 = vmatmul.mubr.f32.gmra.mrb[0].mxu0 %v91
    %v887 = vpop.f32.mrb[0].mxu0
    %v888 = vadd.f32 %v573, %v887
    %v889 = vpop.f32.mrb[0].mxu0
    %890 = vmatprep.mubr.f32.mxu0 %v328
    %891 = vmatmul.mubr.f32.gmra.mrb[0].mxu0 %v95
    %v892 = vpop.f32.mrb[0].mxu0
    %v893 = vadd.f32 %v578, %v892
    %v894 = vpop.f32.mrb[0].mxu0
    %895 = vmatprep.mubr.f32.mxu0 %v331
    %896 = vmatmul.mubr.f32.gmra.mrb[0].mxu0 %v99
    %v897 = vpop.f32.mrb[0].mxu0
    %v898 = vadd.f32 %v583, %v897
    %v899 = vpop.f32.mrb[0].mxu0
    %900 = vmatprep.mubr.f32.mxu0 %v334
    %901 = vmatmul.mubr.f32.gmra.mrb[0].mxu0 %v103
    %v902 = vpop.f32.mrb[0].mxu0
    %v903 = vadd.f32 %v588, %v902
    %v904 = vpop.f32.mrb[0].mxu0
    %905 = vmatprep.mubr.f32.mxu0 %v337
    %906 = vmatmul.mubr.f32.gmra.mrb[0].mxu0 %v107
    %v907 = vpop.f32.mrb[0].mxu0
    %v908 = vadd.f32 %v593, %v907
    %v909 = vpop.f32.mrb[0].mxu0
    %910 = vmatprep.mubr.f32.mxu0 %v340
    %911 = vmatmul.mubr.f32.gmra.mrb[0].mxu0 %v111
    %v912 = vpop.f32.mrb[0].mxu0
    %v913 = vadd.f32 %v598, %v912
    %v914 = vpop.f32.mrb[0].mxu0
    %915 = vmatprep.mubr.f32.mxu0 %v343
    %916 = vmatmul.mubr.f32.gmra.mrb[0].mxu0 %v115
    %v917 = vpop.f32.mrb[0].mxu0
    %v918 = vadd.f32 %v603, %v917
    %v919 = vpop.f32.mrb[0].mxu0
    %920 = vmatprep.mubr.f32.mxu0 %v346
    %921 = vmatmul.mubr.f32.gmra.mrb[0].mxu0 %v119
    %v922 = vpop.f32.mrb[0].mxu0
    %v923 = vadd.f32 %v608, %v922
    %v924 = vpop.f32.mrb[0].mxu0
    %925 = vmatprep.mubr.f32.mxu0 %v349
    %926 = vmatmul.mubr.f32.gmra.mrb[0].mxu0 %v123
    %v927 = vpop.f32.mrb[0].mxu0
    %v928 = vadd.f32 %v613, %v927
    %v929 = vpop.f32.mrb[0].mxu0
    %930 = vmatprep.mubr.f32.mxu0 %v352
    %931 = vmatmul.mubr.f32.gmra.mrb[0].mxu0 %v127
    %v932 = vpop.f32.mrb[0].mxu0
    %v933 = vadd.f32 %v618, %v932
    %v934 = vpop.f32.mrb[0].mxu0
    %935 = vmatprep.mubr.f32.mxu0 %v355
    %936 = vmatmul.mubr.f32.gmra.mrb[0].mxu0 %v131
    %v937 = vpop.f32.mrb[0].mxu0
    %v938 = vadd.f32 %v623, %v937
    %v939 = vpop.f32.mrb[0].mxu0
    %940 = vmatprep.mubr.f32.mxu0 %v358
    %941 = vmatmul.mubr.f32.gmra.mrb[0].mxu0 %v135
    %v942 = vpop.f32.mrb[0].mxu0
    %v943 = vadd.f32 %v628, %v942
    %v944 = vpop.f32.mrb[0].mxu0
    %945 = vmatprep.mubr.f32.mxu0 %v361
    %946 = vmatmul.mubr.f32.gmra.mrb[0].mxu0 %v139
    %v947 = vpop.f32.mrb[0].mxu0
    %v948 = vadd.f32 %v633, %v947
    %v949 = vpop.f32.mrb[0].mxu0
    %950 = vmatprep.mubr.f32.mxu0 %v364
    %951 = vmatmul.mubr.f32.gmra.mrb[0].mxu0 %v143
    %v952 = vpop.f32.mrb[0].mxu0
    %v953 = vadd.f32 %v638, %v952
    %v954 = vpop.f32.mrb[0].mxu0
    %955 = vmatprep.mubr.f32.mxu0 %v367
    %956 = vmatmul.mubr.f32.gmra.mrb[0].mxu0 %v147
    %v957 = vpop.f32.mrb[0].mxu0
    %v958 = vadd.f32 %v643, %v957
    %v959 = vpop.f32.mrb[0].mxu0
    %960 = vmatprep.mubr.f32.mxu0 %v370
    %961 = vmatmul.mubr.f32.gmra.mrb[0].mxu0 %v151
    %v962 = vpop.f32.mrb[0].mxu0
    %v963 = vadd.f32 %v648, %v962
    %v964 = vpop.f32.mrb[0].mxu0
    %965 = vmatprep.mubr.f32.mxu0 %v373
    %966 = vmatmul.mubr.f32.gmra.mrb[0].mxu0 %v155
    %v967 = vpop.f32.mrb[0].mxu0
    %v968 = vadd.f32 %v653, %v967
    %v969 = vpop.f32.mrb[0].mxu0
    %970 = vmatprep.mubr.f32.mxu0 %v376
    %971 = vmatmul.mubr.f32.gmra.mrb[0].mxu0 %v159
    %v972 = vpop.f32.mrb[0].mxu0
    %v973 = vadd.f32 %v658, %v972
    %v974 = vpop.f32.mrb[0].mxu0
    %975 = vmatprep.mubr.f32.mxu0 %v379
    %976 = vmatmul.mubr.f32.gmra.mrb[0].mxu0 %v163
    %v977 = vpop.f32.mrb[0].mxu0
    %v978 = vadd.f32 %v663, %v977
    %v979 = vpop.f32.mrb[0].mxu0
    %980 = vmatprep.mubr.f32.mxu0 %v382
    %981 = vmatmul.mubr.f32.gmra.mrb[0].mxu0 %v167
    %v982 = vpop.f32.mrb[0].mxu0
    %v983 = vadd.f32 %v668, %v982
    %v984 = vpop.f32.mrb[0].mxu0
    %985 = vmatprep.mubr.f32.mxu0 %v385
    %986 = vmatmul.mubr.f32.gmra.mrb[0].mxu0 %v171
    %v987 = vpop.f32.mrb[0].mxu0
    %v988 = vadd.f32 %v673, %v987
    %v989 = vpop.f32.mrb[0].mxu0
    %990 = vmatprep.mubr.f32.mxu0 %v388
    %991 = vmatmul.mubr.f32.gmra.mrb[0].mxu0 %v175
    %v992 = vpop.f32.mrb[0].mxu0
    %v993 = vadd.f32 %v678, %v992
    %v994 = vpop.f32.mrb[0].mxu0
    %995 = vmatprep.mubr.f32.mxu0 %v391
    %996 = vmatmul.mubr.f32.gmra.mrb[0].mxu0 %v179
    %v997 = vpop.f32.mrb[0].mxu0
    %v998 = vadd.f32 %v683, %v997
    %v999 = vpop.f32.mrb[0].mxu0
    %1000 = vmatprep.mubr.f32.mxu0 %v394
    %1001 = vmatmul.mubr.f32.gmra.mrb[0].mxu0 %v183
    %v1002 = vpop.f32.mrb[0].mxu0
    %v1003 = vadd.f32 %v688, %v1002
    %v1004 = vpop.f32.mrb[0].mxu0
    %1005 = vmatprep.mubr.f32.mxu0 %v397
    %1006 = vmatmul.mubr.f32.gmra.mrb[0].mxu0 %v187
    %v1007 = vpop.f32.mrb[0].mxu0
    %v1008 = vadd.f32 %v693, %v1007
    %v1009 = vpop.f32.mrb[0].mxu0
    %1010 = vmatprep.mubr.f32.mxu0 %v400
    %1011 = vmatmul.mubr.f32.gmra.mrb[0].mxu0 %v191
    %v1012 = vpop.f32.mrb[0].mxu0
    %v1013 = vadd.f32 %v698, %v1012
    %v1014 = vpop.f32.mrb[0].mxu0
    %1015 = vmatprep.mubr.f32.mxu0 %v403
    %1016 = vmatmul.mubr.f32.gmra.mrb[0].mxu0 %v195
    %v1017 = vpop.f32.mrb[0].mxu0
    %v1018 = vadd.f32 %v703, %v1017
    %v1019 = vpop.f32.mrb[0].mxu0
    %1020 = vmatprep.mubr.f32.mxu0 %v406
    %1021 = vmatmul.mubr.f32.gmra.mrb[0].mxu0 %v199
    %v1022 = vpop.f32.mrb[0].mxu0
    %v1023 = vadd.f32 %v708, %v1022
    %v1024 = vpop.f32.mrb[0].mxu0
    %1025 = vmatprep.mubr.f32.mxu0 %v409
    %1026 = vmatmul.mubr.f32.gmra.mrb[0].mxu0 %v203
    %v1027 = vpop.f32.mrb[0].mxu0
    %v1028 = vadd.f32 %v713, %v1027
    %v1029 = vpop.f32.mrb[0].mxu0
    %1030 = vmatprep.mubr.f32.mxu0 %v412
    %1031 = vmatmul.mubr.f32.gmra.mrb[0].mxu0 %v207
    %v1032 = vpop.f32.mrb[0].mxu0
    %v1033 = vadd.f32 %v718, %v1032
    %v1034 = vpop.f32.mrb[0].mxu0
    %1035 = vmatprep.mubr.f32.mxu0 %v415
    %1036 = vmatmul.mubr.f32.gmra.mrb[0].mxu0 %v211
    %v1037 = vpop.f32.mrb[0].mxu0
    %v1038 = vadd.f32 %v723, %v1037
    %v1039 = vpop.f32.mrb[0].mxu0
    %1040 = vmatprep.mubr.f32.mxu0 %v418
    %1041 = vmatmul.mubr.f32.gmra.mrb[0].mxu0 %v215
    %v1042 = vpop.f32.mrb[0].mxu0
    %v1043 = vadd.f32 %v728, %v1042
    %v1044 = vpop.f32.mrb[0].mxu0
    %1045 = vmatprep.mubr.f32.mxu0 %v421
    %1046 = vmatmul.mubr.f32.gmra.mrb[0].mxu0 %v219
    %v1047 = vpop.f32.mrb[0].mxu0
    %v1048 = vadd.f32 %v733, %v1047
    %v1049 = vpop.f32.mrb[0].mxu0
    %1050 = vmatprep.mubr.f32.mxu0 %v424
    %1051 = vmatmul.mubr.f32.gmra.mrb[0].mxu0 %v223
    %v1052 = vpop.f32.mrb[0].mxu0
    %v1053 = vadd.f32 %v738, %v1052
    %v1054 = vpop.f32.mrb[0].mxu0
    %1055 = vdwg.mxu0
    %vm1056 = vcmask 400384
    %1057 = vst.msk [vmem:[%s2] sm:$0xff] %vm1056, %v808
    %1058 = vst.msk [vmem:[%s2 + $0x8] sm:$0xff] %vm1056, %v813
    %1059 = vst.msk [vmem:[%s2 + $0x10] sm:$0xff] %vm1056, %v818
    %1060 = vst.msk [vmem:[%s2 + $0x18] sm:$0xff] %vm1056, %v823
    %1061 = vst.msk [vmem:[%s2 + $0x20] sm:$0xff] %vm1056, %v828
    %1062 = vst.msk [vmem:[%s2 + $0x28] sm:$0xff] %vm1056, %v833
    %1063 = vst.msk [vmem:[%s2 + $0x30] sm:$0xff] %vm1056, %v838
    %1064 = vst.msk [vmem:[%s2 + $0x38] sm:$0xff] %vm1056, %v843
    %1065 = vst.msk [vmem:[%s2 + $0x40] sm:$0xff] %vm1056, %v848
    %1066 = vst.msk [vmem:[%s2 + $0x48] sm:$0xff] %vm1056, %v853
    %1067 = vst.msk [vmem:[%s2 + $0x50] sm:$0xff] %vm1056, %v858
    %1068 = vst.msk [vmem:[%s2 + $0x58] sm:$0xff] %vm1056, %v863
    %1069 = vst.msk [vmem:[%s2 + $0x60] sm:$0xff] %vm1056, %v868
    %1070 = vst.msk [vmem:[%s2 + $0x68] sm:$0xff] %vm1056, %v873
    %1071 = vst.msk [vmem:[%s2 + $0x70] sm:$0xff] %vm1056, %v878
    %1072 = vst.msk [vmem:[%s2 + $0x78] sm:$0xff] %vm1056, %v883
    %1073 = vst.msk [vmem:[%s2 + $0x80] sm:$0xff] %vm1056, %v888
    %1074 = vst.msk [vmem:[%s2 + $0x88] sm:$0xff] %vm1056, %v893
    %1075 = vst.msk [vmem:[%s2 + $0x90] sm:$0xff] %vm1056, %v898
    %1076 = vst.msk [vmem:[%s2 + $0x98] sm:$0xff] %vm1056, %v903
    %1077 = vst.msk [vmem:[%s2 + $0xa0] sm:$0xff] %vm1056, %v908
    %1078 = vst.msk [vmem:[%s2 + $0xa8] sm:$0xff] %vm1056, %v913
    %1079 = vst.msk [vmem:[%s2 + $0xb0] sm:$0xff] %vm1056, %v918
    %1080 = vst.msk [vmem:[%s2 + $0xb8] sm:$0xff] %vm1056, %v923
    %1081 = vst.msk [vmem:[%s2 + $0xc0] sm:$0xff] %vm1056, %v928
    %1082 = vst.msk [vmem:[%s2 + $0xc8] sm:$0xff] %vm1056, %v933
    %1083 = vst.msk [vmem:[%s2 + $0xd0] sm:$0xff] %vm1056, %v938
    %1084 = vst.msk [vmem:[%s2 + $0xd8] sm:$0xff] %vm1056, %v943
    %1085 = vst.msk [vmem:[%s2 + $0xe0] sm:$0xff] %vm1056, %v948
    %1086 = vst.msk [vmem:[%s2 + $0xe8] sm:$0xff] %vm1056, %v953
    %1087 = vst.msk [vmem:[%s2 + $0xf0] sm:$0xff] %vm1056, %v958
    %1088 = vst.msk [vmem:[%s2 + $0xf8] sm:$0xff] %vm1056, %v963
    %1089 = vst.msk [vmem:[%s2 + $0x100] sm:$0xff] %vm1056, %v968
    %1090 = vst.msk [vmem:[%s2 + $0x108] sm:$0xff] %vm1056, %v973
    %1091 = vst.msk [vmem:[%s2 + $0x110] sm:$0xff] %vm1056, %v978
    %1092 = vst.msk [vmem:[%s2 + $0x118] sm:$0xff] %vm1056, %v983
    %1093 = vst.msk [vmem:[%s2 + $0x120] sm:$0xff] %vm1056, %v988
    %1094 = vst.msk [vmem:[%s2 + $0x128] sm:$0xff] %vm1056, %v993
    %1095 = vst.msk [vmem:[%s2 + $0x130] sm:$0xff] %vm1056, %v998
    %1096 = vst.msk [vmem:[%s2 + $0x138] sm:$0xff] %vm1056, %v1003
    %1097 = vst.msk [vmem:[%s2 + $0x140] sm:$0xff] %vm1056, %v1008
    %1098 = vst.msk [vmem:[%s2 + $0x148] sm:$0xff] %vm1056, %v1013
    %1099 = vst.msk [vmem:[%s2 + $0x150] sm:$0xff] %vm1056, %v1018
    %1100 = vst.msk [vmem:[%s2 + $0x158] sm:$0xff] %vm1056, %v1023
    %1101 = vst.msk [vmem:[%s2 + $0x160] sm:$0xff] %vm1056, %v1028
    %1102 = vst.msk [vmem:[%s2 + $0x168] sm:$0xff] %vm1056, %v1033
    %1103 = vst.msk [vmem:[%s2 + $0x170] sm:$0xff] %vm1056, %v1038
    %1104 = vst.msk [vmem:[%s2 + $0x178] sm:$0xff] %vm1056, %v1043
    %1105 = vst.msk [vmem:[%s2 + $0x180] sm:$0xff] %vm1056, %v1048
    %1106 = vst.msk [vmem:[%s2 + $0x188] sm:$0xff] %vm1056, %v1053
    // Predicated region
    $region14: #{tpu_custom_call.1} parent=1 // pred_check
      _
    $region15: #{tpu_custom_call.1} parent=1 // pred_check_branch
      %1108 = sbr.rel (0) target = $region17
    $region16: #{tpu_custom_call.1} parent=1 // pred_region
      _
    $region17: #{tpu_custom_call.1} parent=1 // pred_fallthru
      _
    // Predicated region
    $region18: #{tpu_custom_call.1} parent=1 // pred_check
      _
    $region19: #{tpu_custom_call.1} parent=1 // pred_check_branch
      %1110 = sbr.rel (0) target = $region21
    $region20: #{tpu_custom_call.1} parent=1 // pred_region
      _
    $region21: #{tpu_custom_call.1} parent=1 // pred_fallthru
      _
    %1111 = vsyncpa [#allocation3], 1

</llo_original>
